<compile_context>
chip_gen: v7x
topology: tpu7x:2x2x1
jax: 0.10.0
libtpu: 0.0.40
codegen_flags: <defaults>
</compile_context>

<pallas_src>
import functools

import jax
import jax.numpy as jnp
from jax.experimental import pallas as pl
from jax.experimental.pallas import tpu as pltpu

_MIB = 2 ** 20
_SLACK_BYTES = 2 * _MIB  # headroom for compiler-internal scratch / semaphores


def _round_up(a, b):
    return (a + b - 1) // b * b


def _vmem_capacity_bytes():
    """Physical VMEM per TensorCore (128 MiB on v5e/v6e, 64 MiB on v7x)."""
    try:
        info = pltpu.get_tpu_info()
        cap = getattr(info, "vmem_capacity_bytes", None)
        if cap:
            return int(cap)
    except Exception:
        pass
    return 64 * _MIB  # conservative default if the query is unavailable


def _pick_divisor_tile(desired, total, unit=128):
    """Largest multiple of `unit` <= desired that divides `total` (total % unit == 0)."""
    t = min(_round_up(max(desired, unit), unit), total)
    t = (t // unit) * unit
    while t > unit and total % t != 0:
        t -= unit
    return max(t, unit)


def _max_tile_rows(budget, fixed, per_row, gran):
    avail = budget - fixed
    if avail < per_row * gran:
        return 0
    return int(avail // per_row) // gran * gran


def _activation(h, activation):
    if activation == "silu":
        return h * jax.nn.sigmoid(h)  # exp on EUP, mul on VPU
    if activation == "gelu":
        return jax.nn.gelu(h)
    if activation == "relu":
        return jnp.maximum(h, 0.0)
    raise ValueError(f"Unsupported activation: {activation}")


def _maybe_downcast(x, w_dtype):
    """Cast activations to the narrower weight dtype -> fast MXU path, f32 accumulate."""
    w_dtype = jnp.dtype(w_dtype)
    if (w_dtype != x.dtype and jnp.issubdtype(w_dtype, jnp.floating)
            and w_dtype.itemsize < jnp.dtype(x.dtype).itemsize):
        return x.astype(w_dtype)
    return x


# ---------------------------------------------------------------------------
# Kernels
# ---------------------------------------------------------------------------
def _ffn_single_kernel(x_ref, w1_ref, b1_ref, w2_ref, b2_ref, o_ref, *, activation):
    """Full-resident weights: 1-D row grid, no reduction axis, no accumulator."""
    x = _maybe_downcast(x_ref[...], w1_ref.dtype)
    h = jnp.dot(x, w1_ref[...], preferred_element_type=jnp.float32) + b1_ref[...]
    h = _activation(h, activation)
    # dropout == identity in eval mode (see TODO at top).
    o = jnp.dot(h.astype(w2_ref.dtype), w2_ref[...], preferred_element_type=jnp.float32)
    o_ref[...] = (o + b2_ref[...]).astype(o_ref.dtype)


def _ffn_stream_kernel(x_ref, w1_ref, b1_ref, w2_ref, b2_ref, o_ref, acc_ref, *, activation):
    """Streamed weights: grid = (row tiles, I tiles); the I axis is a reduction."""
    j = pl.program_id(1)

    x = _maybe_downcast(x_ref[...], w1_ref.dtype)
    h = jnp.dot(x, w1_ref[...], preferred_element_type=jnp.float32) + b1_ref[...]
    h = _activation(h, activation)
    # dropout == identity in eval mode.
    part = jnp.dot(h.astype(w2_ref.dtype), w2_ref[...], preferred_element_type=jnp.float32)

    @pl.when(j == 0)
    def _():
        acc_ref[...] = part  # direct write: no zero-store + read-modify-write

    @pl.when(j > 0)
    def _():
        acc_ref[...] += part

    @pl.when(j == pl.num_programs(1) - 1)
    def _():
        o_ref[...] = (acc_ref[...] + b2_ref[...]).astype(o_ref.dtype)


# ---------------------------------------------------------------------------
# Wrappers
# ---------------------------------------------------------------------------
def prepare_ffn_params(w1, b1, w2, b2):
    """Pad weights/biases to 128-aligned layout ONCE, outside the per-call hot path.

    w1: [H, I], b1: [I] or [1, I], w2: [I, H], b2: [H] or [1, H]
    (pre-transposed relative to PyTorch nn.Linear's [out, in] weights).
    """
    H, I = w1.shape
    H_pad = _round_up(max(H, 128), 128)
    I_pad = _round_up(max(I, 128), 128)
    b1 = jnp.reshape(b1, (1, -1))
    b2 = jnp.reshape(b2, (1, -1))
    w1p = jnp.pad(w1, ((0, H_pad - H), (0, I_pad - I)))
    b1p = jnp.pad(b1, ((0, 0), (0, I_pad - I)))
    w2p = jnp.pad(w2, ((0, I_pad - I), (0, H_pad - H)))
    b2p = jnp.pad(b2, ((0, 0), (0, H_pad - H)))
    return w1p, b1p, w2p, b2p


@functools.partial(jax.jit, static_argnames=("tm", "ti", "activation", "force_path"))
def ffn_forward(x, w1p, b1p, w2p, b2p, *, tm=1024, ti=512, activation="silu",
                force_path=None):
    """x: [B, S, H] -> [B, S, H]; weights already padded via prepare_ffn_params."""
    B, S, H = x.shape
    H_pad, I_pad = w1p.shape
    M = B * S

    x_bytes = jnp.dtype(x.dtype).itemsize
    out_bytes = x_bytes
    w_bytes = jnp.dtype(w1p.dtype).itemsize

    # Sublane granularity for the row tile (8 for f32, 16 for bf16, 32 for int8/fp8).
    gran = {4: 8, 2: 16, 1: 32}.get(x_bytes, 8)

    # ---- generation-aware VMEM budget --------------------------------------
    vmem_cap = _vmem_capacity_bytes()
    if vmem_cap >= 96 * _MIB:          # v5e / v6e: 128 MiB per TensorCore
        vmem_budget = 100 * _MIB
        vmem_limit = 110 * _MIB
    else:                              # v7x-class (64 MiB per TC) or unknown
        vmem_budget = 42 * _MIB
        vmem_limit = 52 * _MIB

    desired_tm = max(gran, min(tm, _round_up(M, gran)))

    # ---- candidate A: weights fully resident (DMA'd from HBM exactly once) --
    full_fixed = (2 * 2 * H_pad * I_pad * w_bytes            # w1 + w2 (double-buffer acct)
                  + 2 * 8 * (I_pad + H_pad) * w_bytes        # biases (sublane-padded)
                  + _SLACK_BYTES)
    full_per_row = 2 * H_pad * x_bytes + 2 * H_pad * out_bytes + 2 * I_pad * 4
    full_cap = _max_tile_rows(vmem_budget, full_fixed, full_per_row, gran)

    # ---- candidate B: weights streamed in I-tiles ---------------------------
    def _stream_cap(t):
        fixed = (2 * 2 * H_pad * t * w_bytes
                 + 2 * 8 * (t + H_pad) * w_bytes
                 + _SLACK_BYTES)
        per_row = (2 * H_pad * x_bytes + 2 * H_pad * out_bytes
                   + H_pad * 4          # f32 accumulator
                   + 2 * t * 4)         # f32 intermediate + activation temp
        return _max_tile_rows(vmem_budget, fixed, per_row, gran)

    ti_eff = _pick_divisor_tile(ti, I_pad)
    stream_cap = _stream_cap(ti_eff)
    while stream_cap < gran and ti_eff > 128:
        ti_eff = _pick_divisor_tile(ti_eff - 128, I_pad)
        stream_cap = _stream_cap(ti_eff)

    # ---- pick a path and the row tile ---------------------------------------
    if force_path == "full":
        use_full, tm_eff = True, max(gran, min(desired_tm, max(full_cap, gran)))
    elif force_path == "stream":
        use_full, tm_eff = False, max(gran, min(desired_tm, max(stream_cap, gran)))
    elif full_cap >= desired_tm:
        use_full, tm_eff = True, desired_tm
    elif stream_cap >= desired_tm:
        use_full, tm_eff = False, desired_tm
    else:
        use_full = full_cap >= stream_cap
        tm_eff = max(gran, full_cap if use_full else stream_cap)

    # v7x: make sure the "parallel" row axis has >= 2 tiles to feed both TensorCores.
    if vmem_cap < 96 * _MIB and M > 2 * gran and _round_up(M, tm_eff) // tm_eff < 2:
        tm_eff = max(gran, _round_up((M + 1) // 2, gran))

    M_pad = _round_up(M, tm_eff)
    n_row_tiles = M_pad // tm_eff

    # ---- pad activations only (no-op when M % tm == 0 and H % 128 == 0) -----
    x2d = x.reshape(M, H)
    x2d = jnp.pad(x2d, ((0, M_pad - M), (0, H_pad - H)))

    weight_passes = 1 if use_full else n_row_tiles
    cost = pl.CostEstimate(
        flops=int(4 * M * H_pad * I_pad),
        transcendentals=int(M * I_pad),
        bytes_accessed=int(M_pad * H_pad * (x_bytes + out_bytes)
                           + weight_passes * 2 * H_pad * I_pad * w_bytes
                           + (I_pad + H_pad) * w_bytes),
    )

    if use_full:
        out2d = pl.pallas_call(
            functools.partial(_ffn_single_kernel, activation=activation),
            out_shape=jax.ShapeDtypeStruct((M_pad, H_pad), x.dtype),
            grid_spec=pltpu.PrefetchScalarGridSpec(
                num_scalar_prefetch=0,
                grid=(n_row_tiles,),
                in_specs=[
                    pl.BlockSpec((tm_eff, H_pad), lambda i: (i, 0)),   # x row tile
                    pl.BlockSpec((H_pad, I_pad), lambda i: (0, 0)),    # w1 (resident)
                    pl.BlockSpec((1, I_pad), lambda i: (0, 0)),        # b1
                    pl.BlockSpec((I_pad, H_pad), lambda i: (0, 0)),    # w2 (resident)
                    pl.BlockSpec((1, H_pad), lambda i: (0, 0)),        # b2
                ],
                out_specs=pl.BlockSpec((tm_eff, H_pad), lambda i: (i, 0)),
            ),
            compiler_params=pltpu.CompilerParams(
                dimension_semantics=("parallel",),
                vmem_limit_bytes=int(vmem_limit),
            ),
            cost_estimate=cost,
        )(x2d, w1p, b1p, w2p, b2p)
    else:
        out2d = pl.pallas_call(
            functools.partial(_ffn_stream_kernel, activation=activation),
            out_shape=jax.ShapeDtypeStruct((M_pad, H_pad), x.dtype),
            grid_spec=pltpu.PrefetchScalarGridSpec(
                num_scalar_prefetch=0,
                grid=(n_row_tiles, I_pad // ti_eff),
                in_specs=[
                    pl.BlockSpec((tm_eff, H_pad), lambda i, j: (i, 0)),   # x row tile
                    pl.BlockSpec((H_pad, ti_eff), lambda i, j: (0, j)),   # w1 I-slice
                    pl.BlockSpec((1, ti_eff), lambda i, j: (0, j)),       # b1 I-slice
                    pl.BlockSpec((ti_eff, H_pad), lambda i, j: (j, 0)),   # w2 I-slice
                    pl.BlockSpec((1, H_pad), lambda i, j: (0, 0)),        # b2
                ],
                out_specs=pl.BlockSpec((tm_eff, H_pad), lambda i, j: (i, 0)),
                scratch_shapes=[pltpu.VMEM((tm_eff, H_pad), jnp.float32)],
            ),
            compiler_params=pltpu.CompilerParams(
                dimension_semantics=("parallel", "arbitrary"),
                vmem_limit_bytes=int(vmem_limit),
            ),
            cost_estimate=cost,
        )(x2d, w1p, b1p, w2p, b2p)

    return out2d[:M, :H].reshape(B, S, H)


def transformer_feed_forward(x, w1, b1, w2, b2, **kwargs):
    """One-shot convenience wrapper; hot-path users should call prepare_ffn_params once."""
    return ffn_forward(x, *prepare_ffn_params(w1, b1, w2, b2), **kwargs)


def init_params(key, hidden_size, intermediate_size, dtype=jnp.float32):
    """Deterministic init mimicking nn.Linear's uniform(-1/sqrt(fan_in), ...)."""
    k1, k2, k3, k4 = jax.random.split(key, 4)
    lim1 = 1.0 / (hidden_size ** 0.5)
    lim2 = 1.0 / (intermediate_size ** 0.5)
    # stored pre-transposed: w1 [H, I], w2 [I, H]
    w1 = jax.random.uniform(k1, (hidden_size, intermediate_size), dtype, -lim1, lim1)
    b1 = jax.random.uniform(k2, (1, intermediate_size), dtype, -lim1, lim1)
    w2 = jax.random.uniform(k3, (intermediate_size, hidden_size), dtype, -lim2, lim2)
    b2 = jax.random.uniform(k4, (1, hidden_size), dtype, -lim2, lim2)
    return w1, b1, w2, b2


if __name__ == "__main__":
    # Small shapes consistent with the module: batch=2, seq=8, hidden=32, intermediate=64.
    B, S, H, I = 2, 8, 32, 64
    key = jax.random.PRNGKey(0)
    kx, kp, kp2 = jax.random.split(key, 3)
    x = jax.random.normal(kx, (B, S, H), jnp.float32)

    # ---- test 1: f32, full-resident weight path (weights padded once, outside hot path)
    w1, b1, w2, b2 = init_params(kp, H, I)
    params = prepare_ffn_params(w1, b1, w2, b2)
    out = jax.block_until_ready(ffn_forward(x, *params))
    h_ref = x @ w1 + b1[0]
    h_ref = h_ref * jax.nn.sigmoid(h_ref)
    ref = h_ref @ w2 + b2[0]
    assert out.shape == (B, S, H)
    assert jnp.allclose(out, ref, atol=1e-5, rtol=1e-5), "full-path mismatch vs reference"

    # ---- test 2: forced streamed path (I-axis reduction with f32 VMEM accumulator)
    I2 = 384
    w1s, b1s, w2s, b2s = init_params(kp2, H, I2)
    params_s = prepare_ffn_params(w1s, b1s, w2s, b2s)
    out_s = jax.block_until_ready(
        ffn_forward(x, *params_s, ti=128, force_path="stream"))
    h_s = x @ w1s + b1s[0]
    h_s = h_s * jax.nn.sigmoid(h_s)
    ref_s = h_s @ w2s + b2s[0]
    assert jnp.allclose(out_s, ref_s, atol=1e-4, rtol=1e-4), "stream-path mismatch"

    # ---- test 3: bf16 weights (fast MXU path: activations downcast, f32 accumulate)
    w1b, b1b = w1.astype(jnp.bfloat16), b1.astype(jnp.bfloat16)
    w2b, b2b = w2.astype(jnp.bfloat16), b2.astype(jnp.bfloat16)
    params_b = prepare_ffn_params(w1b, b1b, w2b, b2b)
    out_b = jax.block_until_ready(ffn_forward(x, *params_b))
    xb = x.astype(jnp.bfloat16)
    h_b = jnp.dot(xb, w1b, preferred_element_type=jnp.float32) + b1b[0].astype(jnp.float32)
    h_b = h_b * jax.nn.sigmoid(h_b)
    ref_b = (jnp.dot(h_b.astype(jnp.bfloat16), w2b, preferred_element_type=jnp.float32)
             + b2b[0].astype(jnp.float32))
    assert jnp.allclose(out_b, ref_b.astype(out_b.dtype), atol=5e-2, rtol=5e-2), \
        "bf16-path mismatch"

    print("KERNEL_OK")
</pallas_src>

<mosaic_0001>
module attributes {stable_mosaic.version = 11 : i64} {
  func.func @_ffn_single_kernel(%arg0: i32, %arg1: memref<16x128xf32, #tpu.memory_space<vmem>>, %arg2: memref<128x128xf32, #tpu.memory_space<vmem>>, %arg3: memref<1x128xf32, #tpu.memory_space<vmem>>, %arg4: memref<128x128xf32, #tpu.memory_space<vmem>>, %arg5: memref<1x128xf32, #tpu.memory_space<vmem>>, %arg6: memref<16x128xf32, #tpu.memory_space<vmem>>) attributes {dimension_semantics = [#tpu.dimension_semantics<parallel>], iteration_bounds = array<i64: 1>, scalar_prefetch = 0 : i64, scratch_operands = 0 : i64, tpu.core_type = #tpu.core_type<tc>, window_params = [{transform_indices = @transform_0, window_bounds = array<i64: 16, 128>}, {pipeline_mode = #tpu.pipeline_mode<synchronous>, transform_indices = @transform_1, window_bounds = array<i64: 128, 128>}, {pipeline_mode = #tpu.pipeline_mode<synchronous>, transform_indices = @transform_2, window_bounds = array<i64: 1, 128>}, {pipeline_mode = #tpu.pipeline_mode<synchronous>, transform_indices = @transform_3, window_bounds = array<i64: 128, 128>}, {pipeline_mode = #tpu.pipeline_mode<synchronous>, transform_indices = @transform_4, window_bounds = array<i64: 1, 128>}, {transform_indices = @transform_5, window_bounds = array<i64: 16, 128>}]} {
    %c0 = arith.constant 0 : index
    %c0_0 = arith.constant 0 : index
    %0 = vector.load %arg1[%c0, %c0_0] : memref<16x128xf32, #tpu.memory_space<vmem>>, vector<16x128xf32>
    %c0_1 = arith.constant 0 : index
    %c0_2 = arith.constant 0 : index
    %1 = vector.load %arg2[%c0_1, %c0_2] : memref<128x128xf32, #tpu.memory_space<vmem>>, vector<128x128xf32>
    %cst = arith.constant dense<0.000000e+00> : vector<16x128xf32>
    %2 = tpu.matmul %0, %1, %cst {dimension_numbers = #tpu.dot_dimension_numbers<[1], [0], [0], [1], [0, 0, 1, 1], [], []>} : vector<16x128xf32>, vector<128x128xf32>, vector<16x128xf32> -> vector<16x128xf32>
    %c0_3 = arith.constant 0 : index
    %c0_4 = arith.constant 0 : index
    %3 = vector.load %arg3[%c0_3, %c0_4] : memref<1x128xf32, #tpu.memory_space<vmem>>, vector<1x128xf32>
    %4 = vector.broadcast %3 : vector<1x128xf32> to vector<16x128xf32>
    %5 = arith.addf %2, %4 : vector<16x128xf32>
    %6 = arith.negf %5 : vector<16x128xf32>
    %7 = math.exp %6 : vector<16x128xf32>
    %cst_5 = arith.constant 1.000000e+00 : f32
    %8 = vector.broadcast %cst_5 : f32 to vector<16x128xf32>
    %9 = arith.addf %8, %7 : vector<16x128xf32>
    %10 = arith.divf %8, %9 : vector<16x128xf32>
    %11 = arith.mulf %5, %10 : vector<16x128xf32>
    %c0_6 = arith.constant 0 : index
    %c0_7 = arith.constant 0 : index
    %12 = vector.load %arg4[%c0_6, %c0_7] : memref<128x128xf32, #tpu.memory_space<vmem>>, vector<128x128xf32>
    %cst_8 = arith.constant dense<0.000000e+00> : vector<16x128xf32>
    %13 = tpu.matmul %11, %12, %cst_8 {dimension_numbers = #tpu.dot_dimension_numbers<[1], [0], [0], [1], [0, 0, 1, 1], [], []>} : vector<16x128xf32>, vector<128x128xf32>, vector<16x128xf32> -> vector<16x128xf32>
    %c0_9 = arith.constant 0 : index
    %c0_10 = arith.constant 0 : index
    %14 = vector.load %arg5[%c0_9, %c0_10] : memref<1x128xf32, #tpu.memory_space<vmem>>, vector<1x128xf32>
    %15 = vector.broadcast %14 : vector<1x128xf32> to vector<16x128xf32>
    %16 = arith.addf %13, %15 : vector<16x128xf32>
    %c0_11 = arith.constant 0 : index
    %c0_12 = arith.constant 0 : index
    %17 = vector.load %arg6[%c0_11, %c0_12] : memref<16x128xf32, #tpu.memory_space<vmem>>, vector<16x128xf32>
    tpu.vector_store %arg6[%c0_11, %c0_12], %16 {strides = array<i32>} : memref<16x128xf32, #tpu.memory_space<vmem>>, vector<16x128xf32>,
    return
  }
  func.func @transform_0(%arg0: i32) -> (i32, i32) {
    %c0_i32 = arith.constant 0 : i32
    %c0_i32_0 = arith.constant 0 : i32
    return %arg0, %c0_i32 : i32, i32
  }
  func.func @transform_1(%arg0: i32) -> (i32, i32) {
    %c0_i32 = arith.constant 0 : i32
    %c0_i32_0 = arith.constant 0 : i32
    %c0_i32_1 = arith.constant 0 : i32
    return %c0_i32, %c0_i32_0 : i32, i32
  }
  func.func @transform_2(%arg0: i32) -> (i32, i32) {
    %c0_i32 = arith.constant 0 : i32
    %c0_i32_0 = arith.constant 0 : i32
    %c0_i32_1 = arith.constant 0 : i32
    return %c0_i32, %c0_i32_0 : i32, i32
  }
  func.func @transform_3(%arg0: i32) -> (i32, i32) {
    %c0_i32 = arith.constant 0 : i32
    %c0_i32_0 = arith.constant 0 : i32
    %c0_i32_1 = arith.constant 0 : i32
    return %c0_i32, %c0_i32_0 : i32, i32
  }
  func.func @transform_4(%arg0: i32) -> (i32, i32) {
    %c0_i32 = arith.constant 0 : i32
    %c0_i32_0 = arith.constant 0 : i32
    %c0_i32_1 = arith.constant 0 : i32
    return %c0_i32, %c0_i32_0 : i32, i32
  }
  func.func @transform_5(%arg0: i32) -> (i32, i32) {
    %c0_i32 = arith.constant 0 : i32
    %c0_i32_0 = arith.constant 0 : i32
    return %arg0, %c0_i32 : i32, i32
  }
}

</mosaic_0001>

<llo_original>
// kernel: ffn_forward.1
$region0: #{ffn_forward.1}
  #allocation0 [shape = 'u32[]', space=smem, size = 0x4, offset = 0x4, fixed_abs, tag = 'smem constant byte address 0x4 - core index']
  #allocation1 [shape = 'u32[144,128]{1,0:T(1,128)}', space=vmem, size = 0x12000, scoped, tag = 'internal scratch']
  %s0 = inlined_call_operand.vmem [shape: f32[16,128], index: 0, kind: input, shape index: {}]
  %s1 = inlined_call_operand.hbm [shape: f32[128,128], index: 1, kind: input, shape index: {}]
  %s2 = inlined_call_operand.vmem [shape: f32[1,128], index: 2, kind: input, shape index: {}]
  %s3 = inlined_call_operand.hbm [shape: f32[128,128], index: 3, kind: input, shape index: {}]
  %s4 = inlined_call_operand.vmem [shape: f32[1,128], index: 4, kind: input, shape index: {}]
  %s5 = inlined_call_operand.vmem [shape: f32[16,128], index: 5, kind: output, shape index: {}]
  %s6 = sld [smem:[#allocation0]]
  $region38: #{ffn_forward.1} parent=0
    _
  %s8 = ssub.s32 1, %s6
  %s9 = scalar_select 0, %s8, %s6
  $region1: #{ffn_forward.1} parent=0
    #allocation2 [shape = 'u8[65536]{0}', space=vmem, size = 0x10000, scoped, tag = 'input window, operand 1, single buffered']
    #allocation3 [shape = 's32[1]{0}', space=sflag, size = 0x4, scoped, tag = 'scoped memory for ffn_forward.1']
    #allocation4 [shape = 'u8[65536]{0}', space=vmem, size = 0x10000, scoped, tag = 'input window, operand 3, single buffered']
    #allocation5 [shape = 's32[1]{0}', space=sflag, size = 0x4, scoped, tag = 'scoped memory for ffn_forward.1']
    %10 = vsyncpa [#allocation3], 0
    %11 = vsyncpa [#allocation5], 0
    // Predicated region
    $region2: #{ffn_forward.1} parent=1 // pred_check
      _
    $region3: #{ffn_forward.1} parent=1 // pred_check_branch
      %13 = sbr.rel (0) target = $region5
    $region4: #{ffn_forward.1} parent=1 // pred_region
      _
    $region5: #{ffn_forward.1} parent=1 // pred_fallthru
      _
    // Predicated region
    $region6: #{ffn_forward.1} parent=1 // pred_check
      _
    $region7: #{ffn_forward.1} parent=1 // pred_check_branch
      %15 = sbr.rel (0) target = $region9
    $region8: #{ffn_forward.1} parent=1 // pred_region
      %s17 = ssub.s32 2048, 2048
      %18 = vsyncadd [#allocation3], %s17
      %s19 = sshll.u32 [#allocation2], 4
      %s20 = int_to_ptr.vmem [resolvable:$true] %s19
      %25 = dma.hbm_to_vmem [thread:$0]  %s1, 2048, %s20, [#allocation3], 128, 128, 8
    $region9: #{ffn_forward.1} parent=1 // pred_fallthru
      _
    // Predicated region
    $region10: #{ffn_forward.1} parent=1 // pred_check
      _
    $region11: #{ffn_forward.1} parent=1 // pred_check_branch
      %27 = sbr.rel (0) target = $region13
    $region12: #{ffn_forward.1} parent=1 // pred_region
      _
    $region13: #{ffn_forward.1} parent=1 // pred_fallthru
      _
    // Predicated region
    $region14: #{ffn_forward.1} parent=1 // pred_check
      _
    $region15: #{ffn_forward.1} parent=1 // pred_check_branch
      %29 = sbr.rel (0) target = $region17
    $region16: #{ffn_forward.1} parent=1 // pred_region
      %s31 = ssub.s32 2048, 2048
      %32 = vsyncadd [#allocation5], %s31
      %s33 = sshll.u32 [#allocation4], 4
      %s34 = int_to_ptr.vmem [resolvable:$true] %s33
      %39 = dma.hbm_to_vmem [thread:$0]  %s3, 2048, %s34, [#allocation5], 128, 128, 8
    $region17: #{ffn_forward.1} parent=1 // pred_fallthru
      _
    // Predicated region
    $region18: #{ffn_forward.1} parent=1 // pred_check
      _
    $region19: #{ffn_forward.1} parent=1 // pred_check_branch
      %41 = sbr.rel (0) target = $region21
    $region20: #{ffn_forward.1} parent=1 // pred_region
      _
    $region21: #{ffn_forward.1} parent=1 // pred_fallthru
      _
    // Predicated region
    $region22: #{ffn_forward.1} parent=1 // pred_check
      _
    $region23: #{ffn_forward.1} parent=1 // pred_check_branch
      %43 = sbr.rel (0) target = $region25
    $region24: #{ffn_forward.1} parent=1 // pred_region
      %44 = dma.done [#allocation3], 2048
    $region25: #{ffn_forward.1} parent=1 // pred_fallthru
      _
    // Predicated region
    $region26: #{ffn_forward.1} parent=1 // pred_check
      _
    $region27: #{ffn_forward.1} parent=1 // pred_check_branch
      %46 = sbr.rel (0) target = $region29
    $region28: #{ffn_forward.1} parent=1 // pred_region
      %47 = dma.done [#allocation5], 2048
    $region29: #{ffn_forward.1} parent=1 // pred_fallthru
      _
    %v48 = vld [vmem:[%s0] sm:$0xff]
    %v49 = vld [vmem:[%s0 + $0x8] sm:$0xff]
    %v50 = vld [vmem:[#allocation2] sm:$0xff]
    %v51 = vld [vmem:[#allocation2 + $0x8] sm:$0xff]
    %v52 = vld [vmem:[#allocation2 + $0x10] sm:$0xff]
    %v53 = vld [vmem:[#allocation2 + $0x18] sm:$0xff]
    %v54 = vld [vmem:[#allocation2 + $0x20] sm:$0xff]
    %v55 = vld [vmem:[#allocation2 + $0x28] sm:$0xff]
    %v56 = vld [vmem:[#allocation2 + $0x30] sm:$0xff]
    %v57 = vld [vmem:[#allocation2 + $0x38] sm:$0xff]
    %v58 = vld [vmem:[#allocation2 + $0x40] sm:$0xff]
    %v59 = vld [vmem:[#allocation2 + $0x48] sm:$0xff]
    %v60 = vld [vmem:[#allocation2 + $0x50] sm:$0xff]
    %v61 = vld [vmem:[#allocation2 + $0x58] sm:$0xff]
    %v62 = vld [vmem:[#allocation2 + $0x60] sm:$0xff]
    %v63 = vld [vmem:[#allocation2 + $0x68] sm:$0xff]
    %v64 = vld [vmem:[#allocation2 + $0x70] sm:$0xff]
    %v65 = vld [vmem:[#allocation2 + $0x78] sm:$0xff]
    %v66 = vld [vmem:[%s2] sm:$0x1]
    %v68 = vlaneseq
    %v69 = vshrl.u32 %v68, 7
    %v70 = vsub.s32 0, %v69
    %v71 = vrot.slane %v66, %v70
    %73 = vmatprep.subr.mxu0 0.0
    %74 = vmatpush1.msra.mxu0 %v50
    %75 = vmatprep.subr.mxu0 0.0
    %76 = vmatpush1.msra.mxu0 %v51
    %77 = vmatprep.subr.mxu0 0.0
    %78 = vmatpush1.msra.mxu0 %v52
    %79 = vmatprep.subr.mxu0 0.0
    %80 = vmatpush1.msra.mxu0 %v53
    %81 = vmatprep.subr.mxu0 0.0
    %82 = vmatpush1.msra.mxu0 %v54
    %83 = vmatprep.subr.mxu0 0.0
    %84 = vmatpush1.msra.mxu0 %v55
    %85 = vmatprep.subr.mxu0 0.0
    %86 = vmatpush1.msra.mxu0 %v56
    %87 = vmatprep.subr.mxu0 0.0
    %88 = vmatpush1.msra.mxu0 %v57
    %89 = vmatprep.subr.mxu0 0.0
    %90 = vmatpush1.msra.mxu0 %v58
    %91 = vmatprep.subr.mxu0 0.0
    %92 = vmatpush1.msra.mxu0 %v59
    %93 = vmatprep.subr.mxu0 0.0
    %94 = vmatpush1.msra.mxu0 %v60
    %95 = vmatprep.subr.mxu0 0.0
    %96 = vmatpush1.msra.mxu0 %v61
    %97 = vmatprep.subr.mxu0 0.0
    %98 = vmatpush1.msra.mxu0 %v62
    %99 = vmatprep.subr.mxu0 0.0
    %100 = vmatpush1.msra.mxu0 %v63
    %101 = vmatprep.subr.mxu0 0.0
    %102 = vmatpush1.msra.mxu0 %v64
    %103 = vmatprep.subr.mxu0 0.0
    %104 = vmatpush1.msra.mxu0 %v65
    %105 = vmatprep.subr.mxu0 0.0
    %106 = vmatpush1.msra.mxu0 0.0
    %107 = vmatprep.subr.mxu0 0.0
    %108 = vmatpush1.msra.mxu0 0.0
    %109 = vmatprep.subr.mxu0 0.0
    %110 = vmatpush1.msra.mxu0 0.0
    %111 = vmatprep.subr.mxu0 0.0
    %112 = vmatpush1.msra.mxu0 0.0
    %113 = vmatprep.subr.mxu0 0.0
    %114 = vmatpush1.msra.mxu0 0.0
    %115 = vmatprep.subr.mxu0 0.0
    %116 = vmatpush1.msra.mxu0 0.0
    %117 = vmatprep.subr.mxu0 0.0
    %118 = vmatpush1.msra.mxu0 0.0
    %119 = vmatprep.subr.mxu0 0.0
    %120 = vmatpush1.msra.mxu0 0.0
    %121 = vmatprep.subr.mxu0 0.0
    %122 = vmatpush1.msra.mxu0 0.0
    %123 = vmatprep.subr.mxu0 0.0
    %124 = vmatpush1.msra.mxu0 0.0
    %125 = vmatprep.subr.mxu0 0.0
    %126 = vmatpush1.msra.mxu0 0.0
    %127 = vmatprep.subr.mxu0 0.0
    %128 = vmatpush1.msra.mxu0 0.0
    %129 = vmatprep.subr.mxu0 0.0
    %130 = vmatpush1.msra.mxu0 0.0
    %131 = vmatprep.subr.mxu0 0.0
    %132 = vmatpush1.msra.mxu0 0.0
    %133 = vmatprep.subr.mxu0 0.0
    %134 = vmatpush1.msra.mxu0 0.0
    %135 = vmatprep.subr.mxu0 0.0
    %136 = vmatpush1.msra.mxu0 0.0
    %137 = vmatprep.mubr.f32.mxu0 0.0
    %138 = vmatmul.mubr.f32.gmra.mrb[0].mxu0 %v48
    %v139 = vpop.f32.mrb[0].mxu0
    %v140 = vadd.f32 %v71, %v139
    %v141 = vpop.f32.mrb[0].mxu0
    %142 = vmatprep.mubr.f32.mxu0 0.0
    %143 = vmatmul.mubr.f32.gmra.mrb[0].mxu0 %v49
    %v144 = vpop.f32.mrb[0].mxu0
    %v145 = vadd.f32 %v71, %v144
    %v146 = vpop.f32.mrb[0].mxu0
    %147 = vdwg.mxu0
    %v148 = vxor.u32 %v140, 2147483648
    %v149 = vxor.u32 %v145, 2147483648
    %v150 = vmul.f32 %v148, 1.442695
    %v151 = vpow.pop %v150
    %v152 = vmul.f32 %v149, 1.442695
    %v153 = vpow.pop %v152
    %v154 = vadd.f32 %v151, 1.0
    %v155 = vadd.f32 %v153, 1.0
    %v156 = vrcp.pop %v154
    %v157 = vmul.f32 1.0, %v156
    %v158 = vrcp.pop %v155
    %v159 = vmul.f32 1.0, %v158
    %v160 = vmul.f32 %v140, %v157
    %v161 = vmul.f32 %v145, %v159
    %v162 = vld [vmem:[#allocation4] sm:$0xff]
    %v163 = vld [vmem:[#allocation4 + $0x8] sm:$0xff]
    %v164 = vld [vmem:[#allocation4 + $0x10] sm:$0xff]
    %v165 = vld [vmem:[#allocation4 + $0x18] sm:$0xff]
    %v166 = vld [vmem:[#allocation4 + $0x20] sm:$0xff]
    %v167 = vld [vmem:[#allocation4 + $0x28] sm:$0xff]
    %v168 = vld [vmem:[#allocation4 + $0x30] sm:$0xff]
    %v169 = vld [vmem:[#allocation4 + $0x38] sm:$0xff]
    %v170 = vld [vmem:[#allocation4 + $0x40] sm:$0xff]
    %v171 = vld [vmem:[#allocation4 + $0x48] sm:$0xff]
    %v172 = vld [vmem:[#allocation4 + $0x50] sm:$0xff]
    %v173 = vld [vmem:[#allocation4 + $0x58] sm:$0xff]
    %v174 = vld [vmem:[#allocation4 + $0x60] sm:$0xff]
    %v175 = vld [vmem:[#allocation4 + $0x68] sm:$0xff]
    %v176 = vld [vmem:[#allocation4 + $0x70] sm:$0xff]
    %v177 = vld [vmem:[#allocation4 + $0x78] sm:$0xff]
    %v178 = vld [vmem:[%s4] sm:$0x1]
    %v180 = vlaneseq
    %v181 = vshrl.u32 %v180, 7
    %v182 = vsub.s32 0, %v181
    %v183 = vrot.slane %v178, %v182
    %185 = vmatprep.subr.mxu0 0.0
    %186 = vmatpush1.msra.mxu0 %v162
    %187 = vmatprep.subr.mxu0 0.0
    %188 = vmatpush1.msra.mxu0 %v163
    %189 = vmatprep.subr.mxu0 0.0
    %190 = vmatpush1.msra.mxu0 %v164
    %191 = vmatprep.subr.mxu0 0.0
    %192 = vmatpush1.msra.mxu0 %v165
    %193 = vmatprep.subr.mxu0 0.0
    %194 = vmatpush1.msra.mxu0 %v166
    %195 = vmatprep.subr.mxu0 0.0
    %196 = vmatpush1.msra.mxu0 %v167
    %197 = vmatprep.subr.mxu0 0.0
    %198 = vmatpush1.msra.mxu0 %v168
    %199 = vmatprep.subr.mxu0 0.0
    %200 = vmatpush1.msra.mxu0 %v169
    %201 = vmatprep.subr.mxu0 0.0
    %202 = vmatpush1.msra.mxu0 %v170
    %203 = vmatprep.subr.mxu0 0.0
    %204 = vmatpush1.msra.mxu0 %v171
    %205 = vmatprep.subr.mxu0 0.0
    %206 = vmatpush1.msra.mxu0 %v172
    %207 = vmatprep.subr.mxu0 0.0
    %208 = vmatpush1.msra.mxu0 %v173
    %209 = vmatprep.subr.mxu0 0.0
    %210 = vmatpush1.msra.mxu0 %v174
    %211 = vmatprep.subr.mxu0 0.0
    %212 = vmatpush1.msra.mxu0 %v175
    %213 = vmatprep.subr.mxu0 0.0
    %214 = vmatpush1.msra.mxu0 %v176
    %215 = vmatprep.subr.mxu0 0.0
    %216 = vmatpush1.msra.mxu0 %v177
    %217 = vmatprep.subr.mxu0 0.0
    %218 = vmatpush1.msra.mxu0 0.0
    %219 = vmatprep.subr.mxu0 0.0
    %220 = vmatpush1.msra.mxu0 0.0
    %221 = vmatprep.subr.mxu0 0.0
    %222 = vmatpush1.msra.mxu0 0.0
    %223 = vmatprep.subr.mxu0 0.0
    %224 = vmatpush1.msra.mxu0 0.0
    %225 = vmatprep.subr.mxu0 0.0
    %226 = vmatpush1.msra.mxu0 0.0
    %227 = vmatprep.subr.mxu0 0.0
    %228 = vmatpush1.msra.mxu0 0.0
    %229 = vmatprep.subr.mxu0 0.0
    %230 = vmatpush1.msra.mxu0 0.0
    %231 = vmatprep.subr.mxu0 0.0
    %232 = vmatpush1.msra.mxu0 0.0
    %233 = vmatprep.subr.mxu0 0.0
    %234 = vmatpush1.msra.mxu0 0.0
    %235 = vmatprep.subr.mxu0 0.0
    %236 = vmatpush1.msra.mxu0 0.0
    %237 = vmatprep.subr.mxu0 0.0
    %238 = vmatpush1.msra.mxu0 0.0
    %239 = vmatprep.subr.mxu0 0.0
    %240 = vmatpush1.msra.mxu0 0.0
    %241 = vmatprep.subr.mxu0 0.0
    %242 = vmatpush1.msra.mxu0 0.0
    %243 = vmatprep.subr.mxu0 0.0
    %244 = vmatpush1.msra.mxu0 0.0
    %245 = vmatprep.subr.mxu0 0.0
    %246 = vmatpush1.msra.mxu0 0.0
    %247 = vmatprep.subr.mxu0 0.0
    %248 = vmatpush1.msra.mxu0 0.0
    %249 = vmatprep.mubr.f32.mxu0 0.0
    %250 = vmatmul.mubr.f32.gmra.mrb[0].mxu0 %v160
    %v251 = vpop.f32.mrb[0].mxu0
    %v252 = vadd.f32 %v183, %v251
    %v253 = vpop.f32.mrb[0].mxu0
    %254 = vmatprep.mubr.f32.mxu0 0.0
    %255 = vmatmul.mubr.f32.gmra.mrb[0].mxu0 %v161
    %v256 = vpop.f32.mrb[0].mxu0
    %v257 = vadd.f32 %v183, %v256
    %v258 = vpop.f32.mrb[0].mxu0
    %259 = vdwg.mxu0
    %260 = vst [vmem:[%s5] sm:$0xff] %v252
    %261 = vst [vmem:[%s5 + $0x8] sm:$0xff] %v257
    // Predicated region
    $region30: #{ffn_forward.1} parent=1 // pred_check
      _
    $region31: #{ffn_forward.1} parent=1 // pred_check_branch
      %263 = sbr.rel (0) target = $region33
    $region32: #{ffn_forward.1} parent=1 // pred_region
      _
    $region33: #{ffn_forward.1} parent=1 // pred_fallthru
      _
    // Predicated region
    $region34: #{ffn_forward.1} parent=1 // pred_check
      _
    $region35: #{ffn_forward.1} parent=1 // pred_check_branch
      %265 = sbr.rel (0) target = $region37
    $region36: #{ffn_forward.1} parent=1 // pred_region
      _
    $region37: #{ffn_forward.1} parent=1 // pred_fallthru
      _
    %266 = vsyncpa [#allocation3], 1
    %267 = vsyncpa [#allocation5], 1

</llo_original>
